<compile_context>
chip_gen: v7x
topology: tpu7x:2x2x1
jax: 0.10.0
libtpu: 0.0.40
codegen_flags: <defaults>
</compile_context>

<pallas_src>
import functools

import jax
import jax.numpy as jnp
from jax.experimental import pallas as pl
from jax.experimental.pallas import tpu as pltpu


def _round_up(n, m):
    return ((n + m - 1) // m) * m


def _proxynca_kernel(x_ref, pt_ref, lbl_ref, out_ref, pnt_ref, *,
                     alpha, on_weight, off_weight, num_classes,
                     batch_size, block_b):
    i = pl.program_id(0)
    eps_sq = 1e-24  # (torch F.normalize eps = 1e-12) ** 2

    # One-time work: zero the scalar accumulator and L2-normalize the (E, C)
    # transposed proxy tile into a persistent VMEM scratch.
    @pl.when(i == 0)
    def _():
        out_ref[...] = jnp.zeros_like(out_ref)
        PT = pt_ref[...].astype(jnp.float32)                       # (E_pad, C_pad)
        col_sq = jnp.sum(PT * PT, axis=0, keepdims=True)           # (1, C_pad)
        pnt_ref[...] = PT * jax.lax.rsqrt(jnp.maximum(col_sq, eps_sq))

    # Normalize this X tile (scaling constants folded into alpha).
    X = x_ref[...].astype(jnp.float32)                             # (TB, E_pad)
    row_sq = jnp.sum(X * X, axis=-1, keepdims=True)                # (TB, 1)
    Xn = X * jax.lax.rsqrt(jnp.maximum(row_sq, eps_sq))

    # Shift invariance: log_softmax(-cdist(X,P)**2, -1)
    #                 == log_softmax(2*scaling_x*scaling_p * cos_sim, -1).
    logits = alpha * jax.lax.dot_general(
        Xn, pnt_ref[...], (((1,), (0,)), ((), ())),
        preferred_element_type=jnp.float32)                        # (TB, C_pad)

    tb, c_pad = logits.shape
    col_ids = jax.lax.broadcasted_iota(jnp.int32, (tb, c_pad), 1)
    valid_col = col_ids < num_classes
    logits = jnp.where(valid_col, logits, jnp.float32(-1e30))      # mask pad classes

    # Stable log-softmax over the class axis.
    m = jnp.max(logits, axis=-1, keepdims=True)
    lse = jnp.log(jnp.sum(jnp.exp(logits - m), axis=-1, keepdims=True)) + m
    logp = logits - lse                                            # (TB, C_pad)

    # Smoothed cross-entropy without a dense (B, C) label matrix:
    #   per_sample = -(1-s)*logp[y] - (s/(C-1)) * (sum_c logp - logp[y])
    labels = lbl_ref[...]                                          # (TB, 1) int32
    is_true = col_ids == labels
    logp_true = jnp.sum(jnp.where(is_true, logp, 0.0), axis=-1, keepdims=True)
    logp_sum = jnp.sum(jnp.where(valid_col, logp, 0.0), axis=-1, keepdims=True)
    per_sample = (-on_weight) * logp_true - off_weight * (logp_sum - logp_true)

    # Mask padded batch rows before reducing.
    row_ids = jax.lax.broadcasted_iota(jnp.int32, (tb, 1), 0) + i * block_b
    per_sample = jnp.where(row_ids < batch_size, per_sample, 0.0)

    out_ref[...] += jnp.sum(per_sample, axis=0, keepdims=True)     # (1, 1)


def proxynca_loss(X, labels, proxies, *, smoothing_const=0.1,
                  scaling_x=1.0, scaling_p=3.0, block_b=256):
    """ProxyNCA forward. X: (B, E) float, labels: (B,) int, proxies: (C, E)."""
    B, E = X.shape
    C, E2 = proxies.shape
    assert E == E2

    # Lane-dense padding: E, C -> multiples of 128 (lanes), B tile -> multiple of 8.
    E_pad = _round_up(E, 128)
    C_pad = _round_up(C, 128)
    TB = min(block_b, _round_up(B, 8))
    B_pad = _round_up(B, TB)
    nbt = B_pad // TB

    Xp = jnp.zeros((B_pad, E_pad), jnp.float32).at[:B, :E].set(
        X.astype(jnp.float32))
    # Pre-transpose proxies to (E, C) so the kernel matmul is LHS[M,K] x RHS[K,N]
    # with no in-kernel transpose.
    PTp = jnp.zeros((E_pad, C_pad), jnp.float32).at[:E, :C].set(
        proxies.astype(jnp.float32).T)
    Lp = jnp.zeros((B_pad, 1), jnp.int32).at[:B, 0].set(labels.astype(jnp.int32))

    on_weight = 1.0 - float(smoothing_const)
    off_weight = (float(smoothing_const) / (C - 1)) if C > 1 else 0.0
    alpha = 2.0 * float(scaling_x) * float(scaling_p)

    kernel = functools.partial(
        _proxynca_kernel, alpha=alpha, on_weight=on_weight,
        off_weight=off_weight, num_classes=C, batch_size=B, block_b=TB)

    # Size the scoped VMEM limit from the chip (64 MiB on v7x, 128 MiB v5e/v6e).
    try:
        vmem_cap = int(pltpu.get_tpu_info().vmem_capacity_bytes)
    except Exception:
        vmem_cap = 64 * 1024 * 1024
    vmem_limit = vmem_cap * 3 // 4

    # TODO(synk): for very large class counts, additionally tile over C with an
    # online (flash-style) running max/LSE instead of a full (TB, C_pad) logits tile.
    total = pl.pallas_call(
        kernel,
        out_shape=jax.ShapeDtypeStruct((1, 1), jnp.float32),
        grid_spec=pltpu.PrefetchScalarGridSpec(
            num_scalar_prefetch=0,
            grid=(nbt,),
            in_specs=[
                pl.BlockSpec((TB, E_pad), lambda i: (i, 0)),      # X tile
                pl.BlockSpec((E_pad, C_pad), lambda i: (0, 0)),   # proxies^T (resident)
                pl.BlockSpec((TB, 1), lambda i: (i, 0)),          # labels tile
            ],
            out_specs=pl.BlockSpec((1, 1), lambda i: (0, 0)),     # scalar accumulator
            scratch_shapes=[pltpu.VMEM((E_pad, C_pad), jnp.float32)],
        ),
        compiler_params=pltpu.CompilerParams(
            dimension_semantics=("arbitrary",),   # B axis reduces into the accumulator
            vmem_limit_bytes=vmem_limit,
        ),
    )(Xp, PTp, Lp)
    return total[0, 0] / B


if __name__ == "__main__":
    # Small synthetic config consistent with the module:
    #   nb_classes (C) = 8, sz_embedding (E) = 32, batch (B) = 8
    #   smoothing_const = 0.1, scaling_x = 1.0, scaling_p = 3.0
    B, E, C = 8, 32, 8
    key = jax.random.PRNGKey(0)
    k_proxy, k_x, k_lbl = jax.random.split(key, 3)

    # Parameter init mirrors torch.randn(nb_classes, sz_embedding) / 8.
    proxies = jax.random.normal(k_proxy, (C, E), dtype=jnp.float32) / 8.0
    X = jax.random.normal(k_x, (B, E), dtype=jnp.float32)
    labels = jax.random.randint(k_lbl, (B,), 0, C, dtype=jnp.int32)

    loss = proxynca_loss(X, labels, proxies,
                         smoothing_const=0.1, scaling_x=1.0, scaling_p=3.0)
    jax.block_until_ready(loss)

    # Pure-JAX reference (same math as the PyTorch module, no shortcuts).
    Pn = proxies / jnp.maximum(
        jnp.linalg.norm(proxies, axis=-1, keepdims=True), 1e-12) * 3.0
    Xn = X / jnp.maximum(jnp.linalg.norm(X, axis=-1, keepdims=True), 1e-12) * 1.0
    D_ref = jnp.sum((Xn[:, None, :] - Pn[None, :, :]) ** 2, axis=-1)
    onehot = (labels[:, None] == jnp.arange(C)[None, :]).astype(jnp.float32)
    T_ref = onehot * 0.9 + (1.0 - onehot) * (0.1 / (C - 1))
    logp_ref = jax.nn.log_softmax(-D_ref, axis=-1)
    loss_ref = jnp.mean(jnp.sum(-T_ref * logp_ref, axis=-1))

    assert jnp.allclose(loss, loss_ref, atol=1e-4, rtol=1e-4), (loss, loss_ref)
    print("KERNEL_OK")
</pallas_src>

<mosaic_0001>
module attributes {stable_mosaic.version = 11 : i64} {
  func.func @_proxynca_kernel(%arg0: i32, %arg1: memref<8x128xf32, #tpu.memory_space<vmem>>, %arg2: memref<128x128xf32, #tpu.memory_space<vmem>>, %arg3: memref<8x1xi32, #tpu.memory_space<vmem>>, %arg4: memref<1x1xf32, #tpu.memory_space<vmem>>, %arg5: memref<128x128xf32, #tpu.memory_space<vmem>>) attributes {dimension_semantics = [#tpu.dimension_semantics<arbitrary>], iteration_bounds = array<i64: 1>, scalar_prefetch = 0 : i64, scratch_operands = 1 : i64, tpu.core_type = #tpu.core_type<tc>, window_params = [{transform_indices = @transform_0, window_bounds = array<i64: 8, 128>}, {pipeline_mode = #tpu.pipeline_mode<synchronous>, transform_indices = @transform_1, window_bounds = array<i64: 128, 128>}, {transform_indices = @transform_2, window_bounds = array<i64: 8, 1>}, {pipeline_mode = #tpu.pipeline_mode<synchronous>, transform_indices = @transform_3, window_bounds = array<i64: 1, 1>}]} {
    %c0_i32 = arith.constant 0 : i32
    %0 = arith.cmpi eq, %arg0, %c0_i32 : i32
    %1 = arith.extui %0 : i1 to i32
    %c0_i32_0 = arith.constant 0 : i32
    %2 = arith.cmpi ne, %1, %c0_i32_0 : i32
    scf.if %2 {
      %cst_26 = arith.constant 0.000000e+00 : f32
      %62 = vector.broadcast %cst_26 : f32 to vector<1x1xf32>
      %c0_27 = arith.constant 0 : index
      %c0_28 = arith.constant 0 : index
      %63 = vector.load %arg4[%c0_27, %c0_28] : memref<1x1xf32, #tpu.memory_space<vmem>>, vector<1x1xf32>
      tpu.vector_store %arg4[%c0_27, %c0_28], %62 {strides = array<i32>} : memref<1x1xf32, #tpu.memory_space<vmem>>, vector<1x1xf32>,
      %c0_29 = arith.constant 0 : index
      %c0_30 = arith.constant 0 : index
      %64 = vector.load %arg2[%c0_29, %c0_30] : memref<128x128xf32, #tpu.memory_space<vmem>>, vector<128x128xf32>
      %65 = arith.mulf %64, %64 : vector<128x128xf32>
      %cst_31 = arith.constant dense<0.000000e+00> : vector<128xf32>
      %66 = vector.multi_reduction <add>, %65, %cst_31 [0] : vector<128x128xf32> to vector<128xf32>
      %67 = vector.shape_cast %66 : vector<128xf32> to vector<1x128xf32>
      %cst_32 = arith.constant 1.000000e-24 : f32
      %68 = vector.broadcast %cst_32 : f32 to vector<1x128xf32>
      %69 = arith.maximumf %67, %68 : vector<1x128xf32>
      %70 = math.rsqrt %69 : vector<1x128xf32>
      %71 = vector.broadcast %70 : vector<1x128xf32> to vector<128x128xf32>
      %72 = arith.mulf %64, %71 : vector<128x128xf32>
      %c0_33 = arith.constant 0 : index
      %c0_34 = arith.constant 0 : index
      %73 = vector.load %arg5[%c0_33, %c0_34] : memref<128x128xf32, #tpu.memory_space<vmem>>, vector<128x128xf32>
      tpu.vector_store %arg5[%c0_33, %c0_34], %72 {strides = array<i32>} : memref<128x128xf32, #tpu.memory_space<vmem>>, vector<128x128xf32>,
    } else {
    }
    %c0 = arith.constant 0 : index
    %c0_1 = arith.constant 0 : index
    %3 = vector.load %arg1[%c0, %c0_1] : memref<8x128xf32, #tpu.memory_space<vmem>>, vector<8x128xf32>
    %4 = arith.mulf %3, %3 : vector<8x128xf32>
    %cst = arith.constant dense<0.000000e+00> : vector<8xf32>
    %5 = vector.multi_reduction <add>, %4, %cst [1] : vector<8x128xf32> to vector<8xf32>
    %6 = vector.shape_cast %5 : vector<8xf32> to vector<8x1xf32>
    %cst_2 = arith.constant 1.000000e-24 : f32
    %7 = vector.broadcast %cst_2 : f32 to vector<8x1xf32>
    %8 = arith.maximumf %6, %7 : vector<8x1xf32>
    %9 = math.rsqrt %8 : vector<8x1xf32>
    %10 = vector.broadcast %9 : vector<8x1xf32> to vector<8x128xf32>
    %11 = arith.mulf %3, %10 : vector<8x128xf32>
    %c0_3 = arith.constant 0 : index
    %c0_4 = arith.constant 0 : index
    %12 = vector.load %arg5[%c0_3, %c0_4] : memref<128x128xf32, #tpu.memory_space<vmem>>, vector<128x128xf32>
    %cst_5 = arith.constant dense<0.000000e+00> : vector<8x128xf32>
    %13 = tpu.matmul %11, %12, %cst_5 {dimension_numbers = #tpu.dot_dimension_numbers<[1], [0], [0], [1], [0, 0, 1, 1], [], []>} : vector<8x128xf32>, vector<128x128xf32>, vector<8x128xf32> -> vector<8x128xf32>
    %cst_6 = arith.constant 6.000000e+00 : f32
    %14 = vector.broadcast %cst_6 : f32 to vector<8x128xf32>
    %15 = arith.mulf %14, %13 : vector<8x128xf32>
    %16 = tpu.iota {dimensions = array<i32: 1>} : vector<8x128xi32>
    %c8_i32 = arith.constant 8 : i32
    %17 = vector.broadcast %c8_i32 : i32 to vector<8x128xi32>
    %18 = arith.cmpi slt, %16, %17 : vector<8x128xi32>
    %cst_7 = arith.constant -1.000000e+30 : f32
    %19 = vector.broadcast %cst_7 : f32 to vector<8x128xf32>
    %20 = arith.select %18, %15, %19 : vector<8x128xi1>, vector<8x128xf32>
    %cst_8 = arith.constant dense<0xFF800000> : vector<8xf32>
    %21 = vector.multi_reduction <maximumf>, %20, %cst_8 [1] : vector<8x128xf32> to vector<8xf32>
    %22 = vector.shape_cast %21 : vector<8xf32> to vector<8x1xf32>
    %23 = vector.broadcast %22 : vector<8x1xf32> to vector<8x128xf32>
    %24 = arith.subf %20, %23 : vector<8x128xf32>
    %25 = math.exp %24 : vector<8x128xf32>
    %cst_9 = arith.constant dense<0.000000e+00> : vector<8xf32>
    %26 = vector.multi_reduction <add>, %25, %cst_9 [1] : vector<8x128xf32> to vector<8xf32>
    %27 = vector.shape_cast %26 : vector<8xf32> to vector<8x1xf32>
    %28 = math.log %27 : vector<8x1xf32>
    %29 = arith.addf %28, %22 : vector<8x1xf32>
    %30 = vector.broadcast %29 : vector<8x1xf32> to vector<8x128xf32>
    %31 = arith.subf %20, %30 : vector<8x128xf32>
    %c0_10 = arith.constant 0 : index
    %c0_11 = arith.constant 0 : index
    %32 = vector.load %arg3[%c0_10, %c0_11] : memref<8x1xi32, #tpu.memory_space<vmem>>, vector<8x1xi32>
    %33 = vector.broadcast %32 : vector<8x1xi32> to vector<8x128xi32>
    %34 = arith.cmpi eq, %16, %33 : vector<8x128xi32>
    %cst_12 = arith.constant 0.000000e+00 : f32
    %35 = vector.broadcast %cst_12 : f32 to vector<8x128xf32>
    %36 = arith.select %34, %31, %35 : vector<8x128xi1>, vector<8x128xf32>
    %cst_13 = arith.constant dense<0.000000e+00> : vector<8xf32>
    %37 = vector.multi_reduction <add>, %36, %cst_13 [1] : vector<8x128xf32> to vector<8xf32>
    %38 = vector.shape_cast %37 : vector<8xf32> to vector<8x1xf32>
    %cst_14 = arith.constant 0.000000e+00 : f32
    %39 = vector.broadcast %cst_14 : f32 to vector<8x128xf32>
    %40 = arith.select %18, %31, %39 : vector<8x128xi1>, vector<8x128xf32>
    %cst_15 = arith.constant dense<0.000000e+00> : vector<8xf32>
    %41 = vector.multi_reduction <add>, %40, %cst_15 [1] : vector<8x128xf32> to vector<8xf32>
    %42 = vector.shape_cast %41 : vector<8xf32> to vector<8x1xf32>
    %cst_16 = arith.constant -0.899999976 : f32
    %43 = vector.broadcast %cst_16 : f32 to vector<8x1xf32>
    %44 = arith.mulf %43, %38 : vector<8x1xf32>
    %45 = arith.subf %42, %38 : vector<8x1xf32>
    %cst_17 = arith.constant 0.0142857144 : f32
    %46 = vector.broadcast %cst_17 : f32 to vector<8x1xf32>
    %47 = arith.mulf %46, %45 : vector<8x1xf32>
    %48 = arith.subf %44, %47 : vector<8x1xf32>
    %49 = tpu.iota {dimensions = array<i32: 0>} : vector<8x1xi32>
    %c8_i32_18 = arith.constant 8 : i32
    %50 = arith.muli %arg0, %c8_i32_18 : i32
    %51 = vector.broadcast %50 : i32 to vector<8x1xi32>
    %52 = arith.addi %49, %51 : vector<8x1xi32>
    %c8_i32_19 = arith.constant 8 : i32
    %53 = vector.broadcast %c8_i32_19 : i32 to vector<8x1xi32>
    %54 = arith.cmpi slt, %52, %53 : vector<8x1xi32>
    %cst_20 = arith.constant 0.000000e+00 : f32
    %55 = vector.broadcast %cst_20 : f32 to vector<8x1xf32>
    %56 = arith.select %54, %48, %55 : vector<8x1xi1>, vector<8x1xf32>
    %c0_21 = arith.constant 0 : index
    %c0_22 = arith.constant 0 : index
    %57 = vector.load %arg4[%c0_21, %c0_22] : memref<1x1xf32, #tpu.memory_space<vmem>>, vector<1x1xf32>
    %cst_23 = arith.constant dense<0.000000e+00> : vector<1xf32>
    %58 = vector.multi_reduction <add>, %56, %cst_23 [0] : vector<8x1xf32> to vector<1xf32>
    %59 = vector.shape_cast %58 : vector<1xf32> to vector<1x1xf32>
    %60 = arith.addf %57, %59 : vector<1x1xf32>
    %c0_24 = arith.constant 0 : index
    %c0_25 = arith.constant 0 : index
    %61 = vector.load %arg4[%c0_24, %c0_25] : memref<1x1xf32, #tpu.memory_space<vmem>>, vector<1x1xf32>
    tpu.vector_store %arg4[%c0_24, %c0_25], %60 {strides = array<i32>} : memref<1x1xf32, #tpu.memory_space<vmem>>, vector<1x1xf32>,
    return
  }
  func.func @transform_0(%arg0: i32) -> (i32, i32) {
    %c0_i32 = arith.constant 0 : i32
    %c0_i32_0 = arith.constant 0 : i32
    return %arg0, %c0_i32 : i32, i32
  }
  func.func @transform_1(%arg0: i32) -> (i32, i32) {
    %c0_i32 = arith.constant 0 : i32
    %c0_i32_0 = arith.constant 0 : i32
    %c0_i32_1 = arith.constant 0 : i32
    return %c0_i32, %c0_i32_0 : i32, i32
  }
  func.func @transform_2(%arg0: i32) -> (i32, i32) {
    %c0_i32 = arith.constant 0 : i32
    %c0_i32_0 = arith.constant 0 : i32
    return %arg0, %c0_i32 : i32, i32
  }
  func.func @transform_3(%arg0: i32) -> (i32, i32) {
    %c0_i32 = arith.constant 0 : i32
    %c0_i32_0 = arith.constant 0 : i32
    %c0_i32_1 = arith.constant 0 : i32
    return %c0_i32, %c0_i32_0 : i32, i32
  }
}

</mosaic_0001>

<llo_original>
// kernel: tpu_custom_call.1
$region0: #{tpu_custom_call.1}
  #allocation0 [shape = 'u32[]', space=smem, size = 0x4, offset = 0x4, fixed_abs, tag = 'smem constant byte address 0x4 - core index']
  #allocation1 [shape = 'u32[144,128]{1,0:T(1,128)}', space=vmem, size = 0x12000, scoped, tag = 'internal scratch']
  #allocation2 [shape = 'f32[128,128]{1,0:T(8,128)}', space=vmem, size = 0x10000, scoped, tag = 'scratch operand']
  %s0 = inlined_call_operand.vmem [shape: f32[8,128], index: 0, kind: input, shape index: {}]
  %s1 = inlined_call_operand.hbm [shape: f32[128,128], index: 1, kind: input, shape index: {}]
  %s2 = inlined_call_operand.vmem [shape: s32[8,1], index: 2, kind: input, shape index: {}]
  %s3 = inlined_call_operand.hbm [shape: f32[1,1], index: 3, kind: output, shape index: {}]
  %s4 = sld [smem:[#allocation0]]
  $region30: #{tpu_custom_call.1} parent=0
    _
  %s6 = ssub.s32 1, %s4
  %s7 = scalar_select 0, %s6, %s4
  $region1: #{tpu_custom_call.1} parent=0
    #allocation3 [shape = 'u8[65536]{0}', space=vmem, size = 0x10000, scoped, tag = 'input window, operand 1, single buffered']
    #allocation4 [shape = 's32[1]{0}', space=sflag, size = 0x4, scoped, tag = 'scoped memory for tpu_custom_call.1']
    #allocation5 [shape = 's32[1]{0}', space=sflag, size = 0x4, scoped, tag = 'scoped memory for tpu_custom_call.1']
    #allocation6 [shape = 'u8[512]{0}', space=vmem, size = 0x400, scoped, tag = 'output window, operand 0, single buffered']
    %8 = vsyncpa [#allocation4], 0
    %9 = vsyncpa [#allocation5], 0
    // Predicated region
    $region2: #{tpu_custom_call.1} parent=1 // pred_check
      _
    $region3: #{tpu_custom_call.1} parent=1 // pred_check_branch
      %11 = sbr.rel (0) target = $region5
    $region4: #{tpu_custom_call.1} parent=1 // pred_region
      _
    $region5: #{tpu_custom_call.1} parent=1 // pred_fallthru
      _
    // Predicated region
    $region6: #{tpu_custom_call.1} parent=1 // pred_check
      _
    $region7: #{tpu_custom_call.1} parent=1 // pred_check_branch
      %13 = sbr.rel (0) target = $region9
    $region8: #{tpu_custom_call.1} parent=1 // pred_region
      %s15 = ssub.s32 2048, 2048
      %16 = vsyncadd [#allocation4], %s15
      %s17 = sshll.u32 [#allocation3], 4
      %s18 = int_to_ptr.vmem [resolvable:$true] %s17
      %23 = dma.hbm_to_vmem [thread:$0]  %s1, 2048, %s18, [#allocation4], 128, 128, 8
    $region9: #{tpu_custom_call.1} parent=1 // pred_fallthru
      _
    // Predicated region
    $region10: #{tpu_custom_call.1} parent=1 // pred_check
      _
    $region11: #{tpu_custom_call.1} parent=1 // pred_check_branch
      %25 = sbr.rel (0) target = $region13
    $region12: #{tpu_custom_call.1} parent=1 // pred_region
      _
    $region13: #{tpu_custom_call.1} parent=1 // pred_fallthru
      _
    // Predicated region
    $region14: #{tpu_custom_call.1} parent=1 // pred_check
      _
    $region15: #{tpu_custom_call.1} parent=1 // pred_check_branch
      %27 = sbr.rel (0) target = $region17
    $region16: #{tpu_custom_call.1} parent=1 // pred_region
      %28 = dma.done [#allocation4], 2048
    $region17: #{tpu_custom_call.1} parent=1 // pred_fallthru
      _
    %p29 = scmp.eq.s32.totalorder 0, 0
    // Predicated region
    $region18: #{tpu_custom_call.1} parent=1 // pred_check
      %p30 = pneg %p29
    $region19: #{tpu_custom_call.1} parent=1 // pred_check_branch
      %32 = sbr.rel (%p30) target = $region21
    $region20: #{tpu_custom_call.1} parent=1 // pred_region
      %vm33 = vcmask 0
      %34 = vst.msk [vmem:[#allocation6] sm:$0x1] %vm33, 0.0
      %v35 = vld [vmem:[#allocation3] sm:$0xff]
      %v36 = vld [vmem:[#allocation3 + $0x8] sm:$0xff]
      %v37 = vld [vmem:[#allocation3 + $0x10] sm:$0xff]
      %v38 = vld [vmem:[#allocation3 + $0x18] sm:$0xff]
      %v39 = vld [vmem:[#allocation3 + $0x20] sm:$0xff]
      %v40 = vld [vmem:[#allocation3 + $0x28] sm:$0xff]
      %v41 = vld [vmem:[#allocation3 + $0x30] sm:$0xff]
      %v42 = vld [vmem:[#allocation3 + $0x38] sm:$0xff]
      %v43 = vld [vmem:[#allocation3 + $0x40] sm:$0xff]
      %v44 = vld [vmem:[#allocation3 + $0x48] sm:$0xff]
      %v45 = vld [vmem:[#allocation3 + $0x50] sm:$0xff]
      %v46 = vld [vmem:[#allocation3 + $0x58] sm:$0xff]
      %v47 = vld [vmem:[#allocation3 + $0x60] sm:$0xff]
      %v48 = vld [vmem:[#allocation3 + $0x68] sm:$0xff]
      %v49 = vld [vmem:[#allocation3 + $0x70] sm:$0xff]
      %v50 = vld [vmem:[#allocation3 + $0x78] sm:$0xff]
      %v51 = vmul.f32 %v35, %v35
      %v52 = vmul.f32 %v36, %v36
      %v53 = vmul.f32 %v37, %v37
      %v54 = vmul.f32 %v38, %v38
      %v55 = vmul.f32 %v39, %v39
      %v56 = vmul.f32 %v40, %v40
      %v57 = vmul.f32 %v41, %v41
      %v58 = vmul.f32 %v42, %v42
      %v59 = vmul.f32 %v43, %v43
      %v60 = vmul.f32 %v44, %v44
      %v61 = vmul.f32 %v45, %v45
      %v62 = vmul.f32 %v46, %v46
      %v63 = vmul.f32 %v47, %v47
      %v64 = vmul.f32 %v48, %v48
      %v65 = vmul.f32 %v49, %v49
      %v66 = vmul.f32 %v50, %v50
      %v67 = vadd.f32 %v51, %v52
      %v68 = vadd.f32 %v67, %v53
      %v69 = vadd.f32 %v68, %v54
      %v70 = vadd.f32 %v69, %v55
      %v71 = vadd.f32 %v70, %v56
      %v72 = vadd.f32 %v71, %v57
      %v73 = vadd.f32 %v72, %v58
      %v74 = vadd.f32 %v73, %v59
      %v75 = vadd.f32 %v74, %v60
      %v76 = vadd.f32 %v75, %v61
      %v77 = vadd.f32 %v76, %v62
      %v78 = vadd.f32 %v77, %v63
      %v79 = vadd.f32 %v78, %v64
      %v80 = vadd.f32 %v79, %v65
      %v81 = vadd.f32 %v80, %v66
      %v82 = vrot.slane %v81, 4
      %v83 = vadd.f32 %v81, %v82
      %v84 = vrot.slane %v83, 2
      %v85 = vadd.f32 %v83, %v84
      %v86 = vrot.slane %v85, 1
      %v87 = vadd.f32 %v85, %v86
      %v88 = vmax.f32 %v87, 1e-24
      %v89 = vrsqrt.pop %v88
      %v90 = vmul.f32 %v35, %v89
      %v91 = vmul.f32 %v36, %v89
      %v92 = vmul.f32 %v37, %v89
      %v93 = vmul.f32 %v38, %v89
      %v94 = vmul.f32 %v39, %v89
      %v95 = vmul.f32 %v40, %v89
      %v96 = vmul.f32 %v41, %v89
      %v97 = vmul.f32 %v42, %v89
      %v98 = vmul.f32 %v43, %v89
      %v99 = vmul.f32 %v44, %v89
      %v100 = vmul.f32 %v45, %v89
      %v101 = vmul.f32 %v46, %v89
      %v102 = vmul.f32 %v47, %v89
      %v103 = vmul.f32 %v48, %v89
      %v104 = vmul.f32 %v49, %v89
      %v105 = vmul.f32 %v50, %v89
      %106 = vst [vmem:[#allocation2] sm:$0xff] %v90
      %107 = vst [vmem:[#allocation2 + $0x8] sm:$0xff] %v91
      %108 = vst [vmem:[#allocation2 + $0x10] sm:$0xff] %v92
      %109 = vst [vmem:[#allocation2 + $0x18] sm:$0xff] %v93
      %110 = vst [vmem:[#allocation2 + $0x20] sm:$0xff] %v94
      %111 = vst [vmem:[#allocation2 + $0x28] sm:$0xff] %v95
      %112 = vst [vmem:[#allocation2 + $0x30] sm:$0xff] %v96
      %113 = vst [vmem:[#allocation2 + $0x38] sm:$0xff] %v97
      %114 = vst [vmem:[#allocation2 + $0x40] sm:$0xff] %v98
      %115 = vst [vmem:[#allocation2 + $0x48] sm:$0xff] %v99
      %116 = vst [vmem:[#allocation2 + $0x50] sm:$0xff] %v100
      %117 = vst [vmem:[#allocation2 + $0x58] sm:$0xff] %v101
      %118 = vst [vmem:[#allocation2 + $0x60] sm:$0xff] %v102
      %119 = vst [vmem:[#allocation2 + $0x68] sm:$0xff] %v103
      %120 = vst [vmem:[#allocation2 + $0x70] sm:$0xff] %v104
      %121 = vst [vmem:[#allocation2 + $0x78] sm:$0xff] %v105
    $region21: #{tpu_custom_call.1} parent=1 // pred_fallthru
      _
    %v122 = vld [vmem:[%s0] sm:$0xff]
    %v123 = vmul.f32 %v122, %v122
    %124 = vadd.xlane.f32.xlu0 %v123
    %v125 = vpop.xlane.xlu0 %124
    %v126 = vmax.f32 %v125, 1e-24
    %v127 = vrsqrt.pop %v126
    %v128 = vmul.f32 %v122, %v127
    %v129 = vld [vmem:[#allocation2] sm:$0xff]
    %v130 = vld [vmem:[#allocation2 + $0x8] sm:$0xff]
    %v131 = vld [vmem:[#allocation2 + $0x10] sm:$0xff]
    %v132 = vld [vmem:[#allocation2 + $0x18] sm:$0xff]
    %v133 = vld [vmem:[#allocation2 + $0x20] sm:$0xff]
    %v134 = vld [vmem:[#allocation2 + $0x28] sm:$0xff]
    %v135 = vld [vmem:[#allocation2 + $0x30] sm:$0xff]
    %v136 = vld [vmem:[#allocation2 + $0x38] sm:$0xff]
    %v137 = vld [vmem:[#allocation2 + $0x40] sm:$0xff]
    %v138 = vld [vmem:[#allocation2 + $0x48] sm:$0xff]
    %v139 = vld [vmem:[#allocation2 + $0x50] sm:$0xff]
    %v140 = vld [vmem:[#allocation2 + $0x58] sm:$0xff]
    %v141 = vld [vmem:[#allocation2 + $0x60] sm:$0xff]
    %v142 = vld [vmem:[#allocation2 + $0x68] sm:$0xff]
    %v143 = vld [vmem:[#allocation2 + $0x70] sm:$0xff]
    %v144 = vld [vmem:[#allocation2 + $0x78] sm:$0xff]
    %145 = vmatprep.subr.mxu0 0.0
    %146 = vmatpush1.msra.mxu0 %v129
    %147 = vmatprep.subr.mxu0 0.0
    %148 = vmatpush1.msra.mxu0 %v130
    %149 = vmatprep.subr.mxu0 0.0
    %150 = vmatpush1.msra.mxu0 %v131
    %151 = vmatprep.subr.mxu0 0.0
    %152 = vmatpush1.msra.mxu0 %v132
    %153 = vmatprep.subr.mxu0 0.0
    %154 = vmatpush1.msra.mxu0 %v133
    %155 = vmatprep.subr.mxu0 0.0
    %156 = vmatpush1.msra.mxu0 %v134
    %157 = vmatprep.subr.mxu0 0.0
    %158 = vmatpush1.msra.mxu0 %v135
    %159 = vmatprep.subr.mxu0 0.0
    %160 = vmatpush1.msra.mxu0 %v136
    %161 = vmatprep.subr.mxu0 0.0
    %162 = vmatpush1.msra.mxu0 %v137
    %163 = vmatprep.subr.mxu0 0.0
    %164 = vmatpush1.msra.mxu0 %v138
    %165 = vmatprep.subr.mxu0 0.0
    %166 = vmatpush1.msra.mxu0 %v139
    %167 = vmatprep.subr.mxu0 0.0
    %168 = vmatpush1.msra.mxu0 %v140
    %169 = vmatprep.subr.mxu0 0.0
    %170 = vmatpush1.msra.mxu0 %v141
    %171 = vmatprep.subr.mxu0 0.0
    %172 = vmatpush1.msra.mxu0 %v142
    %173 = vmatprep.subr.mxu0 0.0
    %174 = vmatpush1.msra.mxu0 %v143
    %175 = vmatprep.subr.mxu0 0.0
    %176 = vmatpush1.msra.mxu0 %v144
    %177 = vmatprep.subr.mxu0 0.0
    %178 = vmatpush1.msra.mxu0 0.0
    %179 = vmatprep.subr.mxu0 0.0
    %180 = vmatpush1.msra.mxu0 0.0
    %181 = vmatprep.subr.mxu0 0.0
    %182 = vmatpush1.msra.mxu0 0.0
    %183 = vmatprep.subr.mxu0 0.0
    %184 = vmatpush1.msra.mxu0 0.0
    %185 = vmatprep.subr.mxu0 0.0
    %186 = vmatpush1.msra.mxu0 0.0
    %187 = vmatprep.subr.mxu0 0.0
    %188 = vmatpush1.msra.mxu0 0.0
    %189 = vmatprep.subr.mxu0 0.0
    %190 = vmatpush1.msra.mxu0 0.0
    %191 = vmatprep.subr.mxu0 0.0
    %192 = vmatpush1.msra.mxu0 0.0
    %193 = vmatprep.subr.mxu0 0.0
    %194 = vmatpush1.msra.mxu0 0.0
    %195 = vmatprep.subr.mxu0 0.0
    %196 = vmatpush1.msra.mxu0 0.0
    %197 = vmatprep.subr.mxu0 0.0
    %198 = vmatpush1.msra.mxu0 0.0
    %199 = vmatprep.subr.mxu0 0.0
    %200 = vmatpush1.msra.mxu0 0.0
    %201 = vmatprep.subr.mxu0 0.0
    %202 = vmatpush1.msra.mxu0 0.0
    %203 = vmatprep.subr.mxu0 0.0
    %204 = vmatpush1.msra.mxu0 0.0
    %205 = vmatprep.subr.mxu0 0.0
    %206 = vmatpush1.msra.mxu0 0.0
    %207 = vmatprep.subr.mxu0 0.0
    %208 = vmatpush1.msra.mxu0 0.0
    %209 = vmatprep.mubr.f32.mxu0 0.0
    %210 = vmatmul.mubr.f32.gmra.mrb[0].mxu0 %v128
    %v211 = vpop.f32.mrb[0].mxu0
    %v212 = vadd.f32 0.0, %v211
    %v213 = vpop.f32.mrb[0].mxu0
    %214 = vdwg.mxu0
    %v215 = vmul.f32 %v212, 6.0
    %v216 = vlaneseq
    %v217 = vand.u32 %v216, 127
    %vm218 = vcmp.lt.s32.totalorder %v217, 8
    %v219 = vsel %vm218, %v215, -1e+30
    %220 = vmax.xlane.f32.xlu0 %v219
    %v221 = vpop.xlane.xlu0 %220
    %v222 = vsub.f32 %v219, %v221
    %v223 = vmul.f32 %v222, 1.442695
    %v224 = vpow.pop %v223
    %225 = vadd.xlane.f32.xlu0 %v224
    %v226 = vpop.xlane.xlu0 %225
    %v227 = vlog2.pop %v226
    %v228 = vmul.f32 %v227, 0.6931472
    %v229 = vadd.f32 %v228, %v221
    %v230 = vsub.f32 %v219, %v229
    %v231 = vld [vmem:[%s2] sm:$0xff]
    %232 = vset.pattern.permute.xlu0 0
    %233 = vperm.xlu0 %232, %v231
    %v234 = vpop.permute.xlu0 %233
    %vm235 = vcmp.eq.s32.totalorder %v217, %v234
    %v236 = vsel %vm235, %v230, 0.0
    %237 = vadd.xlane.f32.xlu0 %v236
    %v238 = vpop.xlane.xlu0 %237
    %v239 = vsel %vm218, %v230, 0.0
    %240 = vadd.xlane.f32.xlu0 %v239
    %v241 = vpop.xlane.xlu0 %240
    %v242 = vmul.f32 %v238, -0.9
    %v243 = vsub.f32 %v241, %v238
    %v244 = vmul.f32 %v243, 0.014285714
    %v245 = vsub.f32 %v242, %v244
    %v246 = vlaneseq
    %v247 = vshrl.u32 %v246, 7
    %s248 = smul.u32 0, 8
    %v249 = vstv %s248
    %v250 = vadd.s32 %v247, %v249
    %vm251 = vcmp.lt.s32.totalorder %v250, 8
    %v252 = vsel %vm251, %v245, 0.0
    %v253 = vld [vmem:[#allocation6] sm:$0x1]
    %v254 = vrot.slane %v252, 4
    %v255 = vadd.f32 %v252, %v254
    %v256 = vrot.slane %v255, 2
    %v257 = vadd.f32 %v255, %v256
    %v258 = vrot.slane %v257, 1
    %v259 = vadd.f32 %v257, %v258
    %v260 = vadd.f32 %v253, %v259
    %vm261 = vcmask 0
    %262 = vst.msk [vmem:[#allocation6] sm:$0x1] %vm261, %v260
    // Predicated region
    $region22: #{tpu_custom_call.1} parent=1 // pred_check
      _
    $region23: #{tpu_custom_call.1} parent=1 // pred_check_branch
      %264 = sbr.rel (0) target = $region25
    $region24: #{tpu_custom_call.1} parent=1 // pred_region
      %s266 = ssub.s32 16, 16
      %267 = vsyncadd [#allocation5], %s266
      %s269 = sshll.u32 [#allocation6], 4
      %s270 = int_to_ptr.vmem [resolvable:$true] %s269
      %272 = dma.vmem_to_hbm [thread:$0]  %s270, 16, %s3, [#allocation5]
    $region25: #{tpu_custom_call.1} parent=1 // pred_fallthru
      _
    // Predicated region
    $region26: #{tpu_custom_call.1} parent=1 // pred_check
      _
    $region27: #{tpu_custom_call.1} parent=1 // pred_check_branch
      %274 = sbr.rel (0) target = $region29
    $region28: #{tpu_custom_call.1} parent=1 // pred_region
      %275 = dma.done [#allocation5], 16
    $region29: #{tpu_custom_call.1} parent=1 // pred_fallthru
      _
    %276 = vsyncpa [#allocation4], 1
    %277 = vsyncpa [#allocation5], 1

</llo_original>
